<compile_context>
chip_gen: v7x
topology: tpu7x:2x2x1
jax: 0.10.0
libtpu: 0.0.40
codegen_flags: <defaults>
</compile_context>

<pallas_src>
import math

import jax
import jax.numpy as jnp
from jax.experimental import pallas as pl
from jax.experimental.pallas import tpu as pltpu

# ------------------------- config (small, BERT-like) -------------------------
B = 2            # batch
S = 8            # sequence length
H = 32           # hidden_size
NUM_HEADS = 4    # num_attention_heads
HEAD_SIZE = H // NUM_HEADS          # attention_head_size
I = 4 * H        # intermediate_size
LN_EPS = 1e-12   # BERT layer_norm_eps


def _layernorm(x, gamma, beta):
    mean = jnp.mean(x, axis=-1, keepdims=True)
    var = jnp.mean((x - mean) ** 2, axis=-1, keepdims=True)
    inv = jax.lax.rsqrt(var + LN_EPS)
    return (x - mean) * inv * gamma + beta


def _gelu_exact(x):
    # HF BERT default activation: exact (erf) gelu
    return 0.5 * x * (1.0 + jax.lax.erf(x / jnp.sqrt(2.0).astype(x.dtype)))


def bert_layer_kernel(
    x_ref,        # (B*S, H)   flattened hidden states
    mask_ref,     # (B*S, B*S) block-diagonal additive attention mask
    wqkv_ref,     # (H, 3H)    fused Q|K|V weights (Q pre-scaled by 1/sqrt(d))
    bqkv_ref,     # (1, 3H)
    wo_ref,       # (H, H)
    wi_ref,       # (H, I)
    wo2_ref,      # (I, H)
    vec_ref,      # (6, H)     rows: bo, bo2, ln1_g, ln1_b, ln2_g, ln2_b
    bi_ref,       # (1, I)
    out_ref,      # (B*S, H)
):
    x = x_ref[...]
    mask = mask_ref[...]
    Hd = x.shape[-1]

    vec = vec_ref[...]
    bo, bo2 = vec[0:1, :], vec[1:2, :]
    ln1_g, ln1_b = vec[2:3, :], vec[3:4, :]
    ln2_g, ln2_b = vec[4:5, :], vec[5:6, :]

    # ---- fused QKV projection (scale already folded into wq/bq) ----
    qkv = jnp.dot(x, wqkv_ref[...], preferred_element_type=jnp.float32) + bqkv_ref[...]
    q = qkv[:, 0:Hd]
    k = qkv[:, Hd:2 * Hd]
    v = qkv[:, 2 * Hd:3 * Hd]

    # ---- full-slab attention with block-diagonal mask (no head split) ----
    scores = jnp.dot(q, k.T, preferred_element_type=jnp.float32) + mask
    smax = jnp.max(scores, axis=-1, keepdims=True)
    p = jnp.exp(scores - smax)
    denom = jnp.sum(p, axis=-1, keepdims=True)
    probs = p * pl.reciprocal(denom, approx=False)
    # dropout -> identity (eval)
    ctx = jnp.dot(probs, v, preferred_element_type=jnp.float32)      # (B*S, H)

    # ---- BertSelfOutput: dense + LayerNorm(residual) ----
    attn_out = jnp.dot(ctx, wo_ref[...], preferred_element_type=jnp.float32) + bo
    h1 = _layernorm(attn_out + x, ln1_g, ln1_b)

    # ---- BertIntermediate: dense + exact gelu ----
    inter = jnp.dot(h1, wi_ref[...], preferred_element_type=jnp.float32) + bi_ref[...]
    inter = _gelu_exact(inter)

    # ---- BertOutput: dense + LayerNorm(residual) ----
    out = jnp.dot(inter, wo2_ref[...], preferred_element_type=jnp.float32) + bo2
    y = _layernorm(out + h1, ln2_g, ln2_b)

    # TODO(synk): in-kernel relayout to a lane-dense (B, S*H) output row was
    # skipped (sublane->lane reshape); output is only 2 KiB so the masked
    # store cost is negligible here.
    out_ref[...] = y.astype(out_ref.dtype)


def custom_bert_layer(x, attention_mask, params):
    """x: (B, S, H) f32, attention_mask: (B, 1, S) additive f32."""
    Bsz, Ssz, Hsz = x.shape
    Isz = params["wi"].shape[1]
    BS = Bsz * Ssz
    scale = jnp.float32(1.0 / math.sqrt(HEAD_SIZE))

    # --- wrapper-side parameter packing (negligible, done in XLA) ---
    wqkv = jnp.concatenate(
        [params["wq"] * scale, params["wk"], params["wv"]], axis=1)      # (H, 3H)
    bqkv = jnp.concatenate(
        [params["bq"] * scale, params["bk"], params["bv"]], axis=1)      # (1, 3H)
    vec_pack = jnp.concatenate(
        [params["bo"], params["bo2"],
         params["ln1_g"], params["ln1_b"],
         params["ln2_g"], params["ln2_b"]], axis=0)                       # (6, H)

    x_flat = x.reshape(BS, Hsz)

    # Block-diagonal additive mask over flattened keys: same-batch entries get
    # the user attention mask, cross-batch entries get -1e9 (-> 0 after softmax,
    # exactly reproducing per-batch softmax).
    m = attention_mask.reshape(Bsz, Ssz).astype(jnp.float32)
    bid = jnp.repeat(jnp.arange(Bsz), Ssz)
    same = bid[:, None] == bid[None, :]
    full_mask = jnp.where(same, m.reshape(-1)[None, :], jnp.float32(-1e9))  # (BS, BS)

    full = lambda shape: pl.BlockSpec(shape, lambda i: (0,) * len(shape))

    in_specs = [
        full((BS, Hsz)),          # x_flat
        full((BS, BS)),           # full_mask
        full((Hsz, 3 * Hsz)),     # wqkv
        full((1, 3 * Hsz)),       # bqkv
        full((Hsz, Hsz)),         # wo
        full((Hsz, Isz)),         # wi
        full((Isz, Hsz)),         # wo2
        full((6, Hsz)),           # packed small params
        full((1, Isz)),           # bi
    ]

    y_flat = pl.pallas_call(
        bert_layer_kernel,
        out_shape=jax.ShapeDtypeStruct((BS, Hsz), jnp.float32),
        grid_spec=pltpu.PrefetchScalarGridSpec(
            num_scalar_prefetch=0,
            grid=(1,),
            in_specs=in_specs,
            out_specs=full((BS, Hsz)),
        ),
        compiler_params=pltpu.CompilerParams(
            dimension_semantics=("arbitrary",)),
    )(x_flat, full_mask, wqkv, bqkv,
      params["wo"], params["wi"], params["wo2"], vec_pack, params["bi"])

    return y_flat.reshape(Bsz, Ssz, Hsz)


def reference_jax(x, attention_mask, p):
    # pure-JAX reference (same math as the torch module in eval mode)
    q = x @ p["wq"] + p["bq"]
    k = x @ p["wk"] + p["bk"]
    v = x @ p["wv"] + p["bv"]
    scores = jnp.einsum("bsh,bth->bst", q, k) / math.sqrt(HEAD_SIZE)
    scores = scores + attention_mask  # (B,1,S) broadcast
    probs = jax.nn.softmax(scores, axis=-1)
    ctx = jnp.einsum("bst,bth->bsh", probs, v)
    attn_out = ctx @ p["wo"] + p["bo"]

    def ln(t, g, b):
        mean = jnp.mean(t, axis=-1, keepdims=True)
        var = jnp.mean((t - mean) ** 2, axis=-1, keepdims=True)
        return (t - mean) * jax.lax.rsqrt(var + LN_EPS) * g + b

    h1 = ln(attn_out + x, p["ln1_g"], p["ln1_b"])
    inter = jax.nn.gelu(h1 @ p["wi"] + p["bi"], approximate=False)
    out = inter @ p["wo2"] + p["bo2"]
    return ln(out + h1, p["ln2_g"], p["ln2_b"])


def init_params(key):
    ks = jax.random.split(key, 12)
    scale = 0.02

    def w(k, shape):
        return (scale * jax.random.normal(k, shape)).astype(jnp.float32)

    return {
        "wq": w(ks[0], (H, H)), "bq": jnp.zeros((1, H), jnp.float32),
        "wk": w(ks[1], (H, H)), "bk": jnp.zeros((1, H), jnp.float32),
        "wv": w(ks[2], (H, H)), "bv": jnp.zeros((1, H), jnp.float32),
        "wo": w(ks[3], (H, H)), "bo": jnp.zeros((1, H), jnp.float32),
        "ln1_g": jnp.ones((1, H), jnp.float32),
        "ln1_b": jnp.zeros((1, H), jnp.float32),
        "wi": w(ks[4], (H, I)), "bi": jnp.zeros((1, I), jnp.float32),
        "wo2": w(ks[5], (I, H)), "bo2": jnp.zeros((1, H), jnp.float32),
        "ln2_g": jnp.ones((1, H), jnp.float32),
        "ln2_b": jnp.zeros((1, H), jnp.float32),
    }


if __name__ == "__main__":
    key = jax.random.PRNGKey(0)
    k_x, k_p = jax.random.split(key)

    x = jax.random.normal(k_x, (B, S, H), dtype=jnp.float32)
    # additive attention mask: last 2 tokens of batch 1 masked out
    mask = jnp.zeros((B, 1, S), dtype=jnp.float32)
    mask = mask.at[1, 0, -2:].set(-10000.0)

    params = init_params(k_p)

    y = custom_bert_layer(x, mask, params)
    y = jax.block_until_ready(y)

    y_ref = reference_jax(x, mask, params)
    assert jnp.allclose(y, y_ref, atol=1e-4, rtol=1e-4), "mismatch vs reference"

    print("KERNEL_OK")
</pallas_src>

<mosaic_0001>
module attributes {stable_mosaic.version = 11 : i64} {
  func.func @bert_layer_kernel(%arg0: i32, %arg1: memref<16x32xf32, #tpu.memory_space<vmem>>, %arg2: memref<16x16xf32, #tpu.memory_space<vmem>>, %arg3: memref<32x96xf32, #tpu.memory_space<vmem>>, %arg4: memref<1x96xf32, #tpu.memory_space<vmem>>, %arg5: memref<32x32xf32, #tpu.memory_space<vmem>>, %arg6: memref<32x128xf32, #tpu.memory_space<vmem>>, %arg7: memref<128x32xf32, #tpu.memory_space<vmem>>, %arg8: memref<6x32xf32, #tpu.memory_space<vmem>>, %arg9: memref<1x128xf32, #tpu.memory_space<vmem>>, %arg10: memref<16x32xf32, #tpu.memory_space<vmem>>) attributes {dimension_semantics = [#tpu.dimension_semantics<arbitrary>], iteration_bounds = array<i64: 1>, scalar_prefetch = 0 : i64, scratch_operands = 0 : i64, tpu.core_type = #tpu.core_type<tc>, window_params = [{pipeline_mode = #tpu.pipeline_mode<synchronous>, transform_indices = @transform_0, window_bounds = array<i64: 16, 32>}, {pipeline_mode = #tpu.pipeline_mode<synchronous>, transform_indices = @transform_1, window_bounds = array<i64: 16, 16>}, {pipeline_mode = #tpu.pipeline_mode<synchronous>, transform_indices = @transform_2, window_bounds = array<i64: 32, 96>}, {pipeline_mode = #tpu.pipeline_mode<synchronous>, transform_indices = @transform_3, window_bounds = array<i64: 1, 96>}, {pipeline_mode = #tpu.pipeline_mode<synchronous>, transform_indices = @transform_4, window_bounds = array<i64: 32, 32>}, {pipeline_mode = #tpu.pipeline_mode<synchronous>, transform_indices = @transform_5, window_bounds = array<i64: 32, 128>}, {pipeline_mode = #tpu.pipeline_mode<synchronous>, transform_indices = @transform_6, window_bounds = array<i64: 128, 32>}, {pipeline_mode = #tpu.pipeline_mode<synchronous>, transform_indices = @transform_7, window_bounds = array<i64: 6, 32>}, {pipeline_mode = #tpu.pipeline_mode<synchronous>, transform_indices = @transform_8, window_bounds = array<i64: 1, 128>}, {pipeline_mode = #tpu.pipeline_mode<synchronous>, transform_indices = @transform_9, window_bounds = array<i64: 16, 32>}]} {
    %c0 = arith.constant 0 : index
    %c0_0 = arith.constant 0 : index
    %0 = vector.load %arg1[%c0, %c0_0] : memref<16x32xf32, #tpu.memory_space<vmem>>, vector<16x32xf32>
    %c0_1 = arith.constant 0 : index
    %c0_2 = arith.constant 0 : index
    %1 = vector.load %arg2[%c0_1, %c0_2] : memref<16x16xf32, #tpu.memory_space<vmem>>, vector<16x16xf32>
    %c0_3 = arith.constant 0 : index
    %c0_4 = arith.constant 0 : index
    %2 = vector.load %arg8[%c0_3, %c0_4] : memref<6x32xf32, #tpu.memory_space<vmem>>, vector<6x32xf32>
    %3 = vector.extract_strided_slice %2 {offsets = [0, 0], sizes = [1, 32], strides = [1, 1]} : vector<6x32xf32> to vector<1x32xf32>
    %4 = vector.extract_strided_slice %2 {offsets = [1, 0], sizes = [1, 32], strides = [1, 1]} : vector<6x32xf32> to vector<1x32xf32>
    %5 = vector.extract_strided_slice %2 {offsets = [2, 0], sizes = [1, 32], strides = [1, 1]} : vector<6x32xf32> to vector<1x32xf32>
    %6 = vector.extract_strided_slice %2 {offsets = [3, 0], sizes = [1, 32], strides = [1, 1]} : vector<6x32xf32> to vector<1x32xf32>
    %7 = vector.extract_strided_slice %2 {offsets = [4, 0], sizes = [1, 32], strides = [1, 1]} : vector<6x32xf32> to vector<1x32xf32>
    %8 = vector.extract_strided_slice %2 {offsets = [5, 0], sizes = [1, 32], strides = [1, 1]} : vector<6x32xf32> to vector<1x32xf32>
    %c0_5 = arith.constant 0 : index
    %c0_6 = arith.constant 0 : index
    %9 = vector.load %arg3[%c0_5, %c0_6] : memref<32x96xf32, #tpu.memory_space<vmem>>, vector<32x96xf32>
    %cst = arith.constant dense<0.000000e+00> : vector<16x96xf32>
    %10 = tpu.matmul %0, %9, %cst {dimension_numbers = #tpu.dot_dimension_numbers<[1], [0], [0], [1], [0, 0, 1, 1], [], []>} : vector<16x32xf32>, vector<32x96xf32>, vector<16x96xf32> -> vector<16x96xf32>
    %c0_7 = arith.constant 0 : index
    %c0_8 = arith.constant 0 : index
    %11 = vector.load %arg4[%c0_7, %c0_8] : memref<1x96xf32, #tpu.memory_space<vmem>>, vector<1x96xf32>
    %12 = vector.broadcast %11 : vector<1x96xf32> to vector<16x96xf32>
    %13 = arith.addf %10, %12 : vector<16x96xf32>
    %14 = vector.extract_strided_slice %13 {offsets = [0, 0], sizes = [16, 32], strides = [1, 1]} : vector<16x96xf32> to vector<16x32xf32>
    %15 = vector.extract_strided_slice %13 {offsets = [0, 32], sizes = [16, 32], strides = [1, 1]} : vector<16x96xf32> to vector<16x32xf32>
    %16 = vector.extract_strided_slice %13 {offsets = [0, 64], sizes = [16, 32], strides = [1, 1]} : vector<16x96xf32> to vector<16x32xf32>
    %17 = tpu.transpose %15, [1, 0] : vector<16x32xf32> -> vector<32x16xf32>
    %cst_9 = arith.constant dense<0.000000e+00> : vector<16x16xf32>
    %18 = tpu.matmul %14, %17, %cst_9 {dimension_numbers = #tpu.dot_dimension_numbers<[1], [0], [0], [1], [0, 0, 1, 1], [], []>} : vector<16x32xf32>, vector<32x16xf32>, vector<16x16xf32> -> vector<16x16xf32>
    %19 = arith.addf %18, %1 : vector<16x16xf32>
    %cst_10 = arith.constant dense<0xFF800000> : vector<16xf32>
    %20 = vector.multi_reduction <maximumf>, %19, %cst_10 [1] : vector<16x16xf32> to vector<16xf32>
    %21 = vector.shape_cast %20 : vector<16xf32> to vector<16x1xf32>
    %22 = vector.broadcast %21 : vector<16x1xf32> to vector<16x16xf32>
    %23 = arith.subf %19, %22 : vector<16x16xf32>
    %24 = math.exp %23 : vector<16x16xf32>
    %cst_11 = arith.constant dense<0.000000e+00> : vector<16xf32>
    %25 = vector.multi_reduction <add>, %24, %cst_11 [1] : vector<16x16xf32> to vector<16xf32>
    %26 = vector.shape_cast %25 : vector<16xf32> to vector<16x1xf32>
    %27 = tpu.reciprocal %26 : vector<16x1xf32> -> vector<16x1xf32>
    %28 = vector.broadcast %27 : vector<16x1xf32> to vector<16x16xf32>
    %29 = arith.mulf %24, %28 : vector<16x16xf32>
    %cst_12 = arith.constant dense<0.000000e+00> : vector<16x32xf32>
    %30 = tpu.matmul %29, %16, %cst_12 {dimension_numbers = #tpu.dot_dimension_numbers<[1], [0], [0], [1], [0, 0, 1, 1], [], []>} : vector<16x16xf32>, vector<16x32xf32>, vector<16x32xf32> -> vector<16x32xf32>
    %c0_13 = arith.constant 0 : index
    %c0_14 = arith.constant 0 : index
    %31 = vector.load %arg5[%c0_13, %c0_14] : memref<32x32xf32, #tpu.memory_space<vmem>>, vector<32x32xf32>
    %cst_15 = arith.constant dense<0.000000e+00> : vector<16x32xf32>
    %32 = tpu.matmul %30, %31, %cst_15 {dimension_numbers = #tpu.dot_dimension_numbers<[1], [0], [0], [1], [0, 0, 1, 1], [], []>} : vector<16x32xf32>, vector<32x32xf32>, vector<16x32xf32> -> vector<16x32xf32>
    %33 = vector.broadcast %3 : vector<1x32xf32> to vector<16x32xf32>
    %34 = arith.addf %32, %33 : vector<16x32xf32>
    %35 = arith.addf %34, %0 : vector<16x32xf32>
    %cst_16 = arith.constant dense<0.000000e+00> : vector<16xf32>
    %36 = vector.multi_reduction <add>, %35, %cst_16 [1] : vector<16x32xf32> to vector<16xf32>
    %37 = vector.shape_cast %36 : vector<16xf32> to vector<16x1xf32>
    %cst_17 = arith.constant 3.200000e+01 : f32
    %38 = vector.broadcast %cst_17 : f32 to vector<16x1xf32>
    %39 = arith.divf %37, %38 : vector<16x1xf32>
    %40 = vector.broadcast %39 : vector<16x1xf32> to vector<16x32xf32>
    %41 = arith.subf %35, %40 : vector<16x32xf32>
    %42 = arith.mulf %41, %41 : vector<16x32xf32>
    %cst_18 = arith.constant dense<0.000000e+00> : vector<16xf32>
    %43 = vector.multi_reduction <add>, %42, %cst_18 [1] : vector<16x32xf32> to vector<16xf32>
    %44 = vector.shape_cast %43 : vector<16xf32> to vector<16x1xf32>
    %cst_19 = arith.constant 3.200000e+01 : f32
    %45 = vector.broadcast %cst_19 : f32 to vector<16x1xf32>
    %46 = arith.divf %44, %45 : vector<16x1xf32>
    %cst_20 = arith.constant 9.99999996E-13 : f32
    %47 = vector.broadcast %cst_20 : f32 to vector<16x1xf32>
    %48 = arith.addf %46, %47 : vector<16x1xf32>
    %49 = math.rsqrt %48 : vector<16x1xf32>
    %50 = vector.broadcast %39 : vector<16x1xf32> to vector<16x32xf32>
    %51 = arith.subf %35, %50 : vector<16x32xf32>
    %52 = vector.broadcast %49 : vector<16x1xf32> to vector<16x32xf32>
    %53 = arith.mulf %51, %52 : vector<16x32xf32>
    %54 = vector.broadcast %5 : vector<1x32xf32> to vector<16x32xf32>
    %55 = arith.mulf %53, %54 : vector<16x32xf32>
    %56 = vector.broadcast %6 : vector<1x32xf32> to vector<16x32xf32>
    %57 = arith.addf %55, %56 : vector<16x32xf32>
    %c0_21 = arith.constant 0 : index
    %c0_22 = arith.constant 0 : index
    %58 = vector.load %arg6[%c0_21, %c0_22] : memref<32x128xf32, #tpu.memory_space<vmem>>, vector<32x128xf32>
    %cst_23 = arith.constant dense<0.000000e+00> : vector<16x128xf32>
    %59 = tpu.matmul %57, %58, %cst_23 {dimension_numbers = #tpu.dot_dimension_numbers<[1], [0], [0], [1], [0, 0, 1, 1], [], []>} : vector<16x32xf32>, vector<32x128xf32>, vector<16x128xf32> -> vector<16x128xf32>
    %c0_24 = arith.constant 0 : index
    %c0_25 = arith.constant 0 : index
    %60 = vector.load %arg9[%c0_24, %c0_25] : memref<1x128xf32, #tpu.memory_space<vmem>>, vector<1x128xf32>
    %61 = vector.broadcast %60 : vector<1x128xf32> to vector<16x128xf32>
    %62 = arith.addf %59, %61 : vector<16x128xf32>
    %cst_26 = arith.constant 5.000000e-01 : f32
    %63 = vector.broadcast %cst_26 : f32 to vector<16x128xf32>
    %64 = arith.mulf %63, %62 : vector<16x128xf32>
    %cst_27 = arith.constant 2.000000e+00 : f32
    %65 = math.sqrt %cst_27 : f32
    %66 = vector.broadcast %65 : f32 to vector<16x128xf32>
    %67 = arith.divf %62, %66 : vector<16x128xf32>
    %68 = math.erf %67 : vector<16x128xf32>
    %cst_28 = arith.constant 1.000000e+00 : f32
    %69 = vector.broadcast %cst_28 : f32 to vector<16x128xf32>
    %70 = arith.addf %69, %68 : vector<16x128xf32>
    %71 = arith.mulf %64, %70 : vector<16x128xf32>
    %c0_29 = arith.constant 0 : index
    %c0_30 = arith.constant 0 : index
    %72 = vector.load %arg7[%c0_29, %c0_30] : memref<128x32xf32, #tpu.memory_space<vmem>>, vector<128x32xf32>
    %cst_31 = arith.constant dense<0.000000e+00> : vector<16x32xf32>
    %73 = tpu.matmul %71, %72, %cst_31 {dimension_numbers = #tpu.dot_dimension_numbers<[1], [0], [0], [1], [0, 0, 1, 1], [], []>} : vector<16x128xf32>, vector<128x32xf32>, vector<16x32xf32> -> vector<16x32xf32>
    %74 = vector.broadcast %4 : vector<1x32xf32> to vector<16x32xf32>
    %75 = arith.addf %73, %74 : vector<16x32xf32>
    %76 = arith.addf %75, %57 : vector<16x32xf32>
    %cst_32 = arith.constant dense<0.000000e+00> : vector<16xf32>
    %77 = vector.multi_reduction <add>, %76, %cst_32 [1] : vector<16x32xf32> to vector<16xf32>
    %78 = vector.shape_cast %77 : vector<16xf32> to vector<16x1xf32>
    %cst_33 = arith.constant 3.200000e+01 : f32
    %79 = vector.broadcast %cst_33 : f32 to vector<16x1xf32>
    %80 = arith.divf %78, %79 : vector<16x1xf32>
    %81 = vector.broadcast %80 : vector<16x1xf32> to vector<16x32xf32>
    %82 = arith.subf %76, %81 : vector<16x32xf32>
    %83 = arith.mulf %82, %82 : vector<16x32xf32>
    %cst_34 = arith.constant dense<0.000000e+00> : vector<16xf32>
    %84 = vector.multi_reduction <add>, %83, %cst_34 [1] : vector<16x32xf32> to vector<16xf32>
    %85 = vector.shape_cast %84 : vector<16xf32> to vector<16x1xf32>
    %cst_35 = arith.constant 3.200000e+01 : f32
    %86 = vector.broadcast %cst_35 : f32 to vector<16x1xf32>
    %87 = arith.divf %85, %86 : vector<16x1xf32>
    %cst_36 = arith.constant 9.99999996E-13 : f32
    %88 = vector.broadcast %cst_36 : f32 to vector<16x1xf32>
    %89 = arith.addf %87, %88 : vector<16x1xf32>
    %90 = math.rsqrt %89 : vector<16x1xf32>
    %91 = vector.broadcast %80 : vector<16x1xf32> to vector<16x32xf32>
    %92 = arith.subf %76, %91 : vector<16x32xf32>
    %93 = vector.broadcast %90 : vector<16x1xf32> to vector<16x32xf32>
    %94 = arith.mulf %92, %93 : vector<16x32xf32>
    %95 = vector.broadcast %7 : vector<1x32xf32> to vector<16x32xf32>
    %96 = arith.mulf %94, %95 : vector<16x32xf32>
    %97 = vector.broadcast %8 : vector<1x32xf32> to vector<16x32xf32>
    %98 = arith.addf %96, %97 : vector<16x32xf32>
    %c0_37 = arith.constant 0 : index
    %c0_38 = arith.constant 0 : index
    %99 = vector.load %arg10[%c0_37, %c0_38] : memref<16x32xf32, #tpu.memory_space<vmem>>, vector<16x32xf32>
    tpu.vector_store %arg10[%c0_37, %c0_38], %98 {strides = array<i32>} : memref<16x32xf32, #tpu.memory_space<vmem>>, vector<16x32xf32>,
    return
  }
  func.func @transform_0(%arg0: i32) -> (i32, i32) {
    %c0_i32 = arith.constant 0 : i32
    %c0_i32_0 = arith.constant 0 : i32
    %c0_i32_1 = arith.constant 0 : i32
    return %c0_i32, %c0_i32_0 : i32, i32
  }
  func.func @transform_1(%arg0: i32) -> (i32, i32) {
    %c0_i32 = arith.constant 0 : i32
    %c0_i32_0 = arith.constant 0 : i32
    %c0_i32_1 = arith.constant 0 : i32
    return %c0_i32, %c0_i32_0 : i32, i32
  }
  func.func @transform_2(%arg0: i32) -> (i32, i32) {
    %c0_i32 = arith.constant 0 : i32
    %c0_i32_0 = arith.constant 0 : i32
    %c0_i32_1 = arith.constant 0 : i32
    return %c0_i32, %c0_i32_0 : i32, i32
  }
  func.func @transform_3(%arg0: i32) -> (i32, i32) {
    %c0_i32 = arith.constant 0 : i32
    %c0_i32_0 = arith.constant 0 : i32
    %c0_i32_1 = arith.constant 0 : i32
    return %c0_i32, %c0_i32_0 : i32, i32
  }
  func.func @transform_4(%arg0: i32) -> (i32, i32) {
    %c0_i32 = arith.constant 0 : i32
    %c0_i32_0 = arith.constant 0 : i32
    %c0_i32_1 = arith.constant 0 : i32
    return %c0_i32, %c0_i32_0 : i32, i32
  }
  func.func @transform_5(%arg0: i32) -> (i32, i32) {
    %c0_i32 = arith.constant 0 : i32
    %c0_i32_0 = arith.constant 0 : i32
    %c0_i32_1 = arith.constant 0 : i32
    return %c0_i32, %c0_i32_0 : i32, i32
  }
  func.func @transform_6(%arg0: i32) -> (i32, i32) {
    %c0_i32 = arith.constant 0 : i32
    %c0_i32_0 = arith.constant 0 : i32
    %c0_i32_1 = arith.constant 0 : i32
    return %c0_i32, %c0_i32_0 : i32, i32
  }
  func.func @transform_7(%arg0: i32) -> (i32, i32) {
    %c0_i32 = arith.constant 0 : i32
    %c0_i32_0 = arith.constant 0 : i32
    %c0_i32_1 = arith.constant 0 : i32
    return %c0_i32, %c0_i32_0 : i32, i32
  }
  func.func @transform_8(%arg0: i32) -> (i32, i32) {
    %c0_i32 = arith.constant 0 : i32
    %c0_i32_0 = arith.constant 0 : i32
    %c0_i32_1 = arith.constant 0 : i32
    return %c0_i32, %c0_i32_0 : i32, i32
  }
  func.func @transform_9(%arg0: i32) -> (i32, i32) {
    %c0_i32 = arith.constant 0 : i32
    %c0_i32_0 = arith.constant 0 : i32
    %c0_i32_1 = arith.constant 0 : i32
    return %c0_i32, %c0_i32_0 : i32, i32
  }
}

</mosaic_0001>

<llo_original>
// kernel: tpu_custom_call.1
$region0: #{tpu_custom_call.1}
  #allocation0 [shape = 'u32[]', space=smem, size = 0x4, offset = 0x4, fixed_abs, tag = 'smem constant byte address 0x4 - core index']
  #allocation1 [shape = 'u32[144,128]{1,0:T(1,128)}', space=vmem, size = 0x12000, scoped, tag = 'internal scratch']
  %s0 = inlined_call_operand.vmem [shape: f32[16,32], index: 0, kind: input, shape index: {}]
  %s1 = inlined_call_operand.vmem [shape: f32[16,16], index: 1, kind: input, shape index: {}]
  %s2 = inlined_call_operand.vmem [shape: f32[32,96], index: 2, kind: input, shape index: {}]
  %s3 = inlined_call_operand.vmem [shape: f32[1,96], index: 3, kind: input, shape index: {}]
  %s4 = inlined_call_operand.vmem [shape: f32[32,32], index: 4, kind: input, shape index: {}]
  %s5 = inlined_call_operand.vmem [shape: f32[32,128], index: 5, kind: input, shape index: {}]
  %s6 = inlined_call_operand.vmem [shape: f32[128,32], index: 6, kind: input, shape index: {}]
  %s7 = inlined_call_operand.vmem [shape: f32[6,32], index: 7, kind: input, shape index: {}]
  %s8 = inlined_call_operand.vmem [shape: f32[1,128], index: 8, kind: input, shape index: {}]
  %s9 = inlined_call_operand.hbm [shape: f32[16,32], index: 9, kind: output, shape index: {}]
  %s10 = sld [smem:[#allocation0]]
  $region46: #{tpu_custom_call.1} parent=0
    _
  %s12 = ssub.s32 1, %s10
  %s13 = scalar_select 0, %s12, %s10
  $region1: #{tpu_custom_call.1} parent=0
    #allocation2 [shape = 'u8[8192]{0}', space=vmem, size = 0x2000, scoped, tag = 'output window, operand 0, single buffered']
    #allocation3 [shape = 's32[1]{0}', space=sflag, size = 0x4, scoped, tag = 'scoped memory for tpu_custom_call.1']
    %14 = vsyncpa [#allocation3], 0
    // Predicated region
    $region2: #{tpu_custom_call.1} parent=1 // pred_check
      _
    $region3: #{tpu_custom_call.1} parent=1 // pred_check_branch
      %16 = sbr.rel (0) target = $region5
    $region4: #{tpu_custom_call.1} parent=1 // pred_region
      _
    $region5: #{tpu_custom_call.1} parent=1 // pred_fallthru
      _
    // Predicated region
    $region6: #{tpu_custom_call.1} parent=1 // pred_check
      _
    $region7: #{tpu_custom_call.1} parent=1 // pred_check_branch
      %18 = sbr.rel (0) target = $region9
    $region8: #{tpu_custom_call.1} parent=1 // pred_region
      _
    $region9: #{tpu_custom_call.1} parent=1 // pred_fallthru
      _
    // Predicated region
    $region10: #{tpu_custom_call.1} parent=1 // pred_check
      _
    $region11: #{tpu_custom_call.1} parent=1 // pred_check_branch
      %20 = sbr.rel (0) target = $region13
    $region12: #{tpu_custom_call.1} parent=1 // pred_region
      _
    $region13: #{tpu_custom_call.1} parent=1 // pred_fallthru
      _
    // Predicated region
    $region14: #{tpu_custom_call.1} parent=1 // pred_check
      _
    $region15: #{tpu_custom_call.1} parent=1 // pred_check_branch
      %22 = sbr.rel (0) target = $region17
    $region16: #{tpu_custom_call.1} parent=1 // pred_region
      _
    $region17: #{tpu_custom_call.1} parent=1 // pred_fallthru
      _
    // Predicated region
    $region18: #{tpu_custom_call.1} parent=1 // pred_check
      _
    $region19: #{tpu_custom_call.1} parent=1 // pred_check_branch
      %24 = sbr.rel (0) target = $region21
    $region20: #{tpu_custom_call.1} parent=1 // pred_region
      _
    $region21: #{tpu_custom_call.1} parent=1 // pred_fallthru
      _
    // Predicated region
    $region22: #{tpu_custom_call.1} parent=1 // pred_check
      _
    $region23: #{tpu_custom_call.1} parent=1 // pred_check_branch
      %26 = sbr.rel (0) target = $region25
    $region24: #{tpu_custom_call.1} parent=1 // pred_region
      _
    $region25: #{tpu_custom_call.1} parent=1 // pred_fallthru
      _
    // Predicated region
    $region26: #{tpu_custom_call.1} parent=1 // pred_check
      _
    $region27: #{tpu_custom_call.1} parent=1 // pred_check_branch
      %28 = sbr.rel (0) target = $region29
    $region28: #{tpu_custom_call.1} parent=1 // pred_region
      _
    $region29: #{tpu_custom_call.1} parent=1 // pred_fallthru
      _
    // Predicated region
    $region30: #{tpu_custom_call.1} parent=1 // pred_check
      _
    $region31: #{tpu_custom_call.1} parent=1 // pred_check_branch
      %30 = sbr.rel (0) target = $region33
    $region32: #{tpu_custom_call.1} parent=1 // pred_region
      _
    $region33: #{tpu_custom_call.1} parent=1 // pred_fallthru
      _
    // Predicated region
    $region34: #{tpu_custom_call.1} parent=1 // pred_check
      _
    $region35: #{tpu_custom_call.1} parent=1 // pred_check_branch
      %32 = sbr.rel (0) target = $region37
    $region36: #{tpu_custom_call.1} parent=1 // pred_region
      _
    $region37: #{tpu_custom_call.1} parent=1 // pred_fallthru
      _
    %v33 = vld [vmem:[%s0] sm:$0xff]
    %v34 = vld [vmem:[%s0 + $0x8] sm:$0xff]
    %v35 = vld [vmem:[%s1] sm:$0xff]
    %v36 = vld [vmem:[%s1 + $0x8] sm:$0xff]
    %v37 = vld [vmem:[%s7] sm:$0x3f]
    %v38 = vld [vmem:[%s2] sm:$0xff]
    %v39 = vld [vmem:[%s2 + $0x8] sm:$0xff]
    %v40 = vld [vmem:[%s2 + $0x10] sm:$0xff]
    %v41 = vld [vmem:[%s2 + $0x18] sm:$0xff]
    %v42 = vld [vmem:[%s3] sm:$0x1]
    %v44 = vlaneseq
    %v45 = vshrl.u32 %v44, 7
    %v46 = vsub.s32 0, %v45
    %v47 = vrot.slane %v42, %v46
    %vm49 = vcmask 261120
    %v51 = vsel %vm49, %v33, 0
    %v54 = vsel %vm49, %v34, 0
    %56 = vmatprep.subr.mxu0 0.0
    %57 = vmatpush1.msra.mxu0 %v38
    %58 = vmatprep.subr.mxu0 0.0
    %59 = vmatpush1.msra.mxu0 %v39
    %60 = vmatprep.subr.mxu0 0.0
    %61 = vmatpush1.msra.mxu0 %v40
    %62 = vmatprep.subr.mxu0 0.0
    %63 = vmatpush1.msra.mxu0 %v41
    %64 = vmatprep.subr.mxu0 0.0
    %65 = vmatpush1.msra.mxu0 0.0
    %66 = vmatprep.subr.mxu0 0.0
    %67 = vmatpush1.msra.mxu0 0.0
    %68 = vmatprep.subr.mxu0 0.0
    %69 = vmatpush1.msra.mxu0 0.0
    %70 = vmatprep.subr.mxu0 0.0
    %71 = vmatpush1.msra.mxu0 0.0
    %72 = vmatprep.subr.mxu0 0.0
    %73 = vmatpush1.msra.mxu0 0.0
    %74 = vmatprep.subr.mxu0 0.0
    %75 = vmatpush1.msra.mxu0 0.0
    %76 = vmatprep.subr.mxu0 0.0
    %77 = vmatpush1.msra.mxu0 0.0
    %78 = vmatprep.subr.mxu0 0.0
    %79 = vmatpush1.msra.mxu0 0.0
    %80 = vmatprep.subr.mxu0 0.0
    %81 = vmatpush1.msra.mxu0 0.0
    %82 = vmatprep.subr.mxu0 0.0
    %83 = vmatpush1.msra.mxu0 0.0
    %84 = vmatprep.subr.mxu0 0.0
    %85 = vmatpush1.msra.mxu0 0.0
    %86 = vmatprep.subr.mxu0 0.0
    %87 = vmatpush1.msra.mxu0 0.0
    %88 = vmatprep.subr.mxu0 0.0
    %89 = vmatpush1.msra.mxu0 0.0
    %90 = vmatprep.subr.mxu0 0.0
    %91 = vmatpush1.msra.mxu0 0.0
    %92 = vmatprep.subr.mxu0 0.0
    %93 = vmatpush1.msra.mxu0 0.0
    %94 = vmatprep.subr.mxu0 0.0
    %95 = vmatpush1.msra.mxu0 0.0
    %96 = vmatprep.subr.mxu0 0.0
    %97 = vmatpush1.msra.mxu0 0.0
    %98 = vmatprep.subr.mxu0 0.0
    %99 = vmatpush1.msra.mxu0 0.0
    %100 = vmatprep.subr.mxu0 0.0
    %101 = vmatpush1.msra.mxu0 0.0
    %102 = vmatprep.subr.mxu0 0.0
    %103 = vmatpush1.msra.mxu0 0.0
    %104 = vmatprep.subr.mxu0 0.0
    %105 = vmatpush1.msra.mxu0 0.0
    %106 = vmatprep.subr.mxu0 0.0
    %107 = vmatpush1.msra.mxu0 0.0
    %108 = vmatprep.subr.mxu0 0.0
    %109 = vmatpush1.msra.mxu0 0.0
    %110 = vmatprep.subr.mxu0 0.0
    %111 = vmatpush1.msra.mxu0 0.0
    %112 = vmatprep.subr.mxu0 0.0
    %113 = vmatpush1.msra.mxu0 0.0
    %114 = vmatprep.subr.mxu0 0.0
    %115 = vmatpush1.msra.mxu0 0.0
    %116 = vmatprep.subr.mxu0 0.0
    %117 = vmatpush1.msra.mxu0 0.0
    %118 = vmatprep.subr.mxu0 0.0
    %119 = vmatpush1.msra.mxu0 0.0
    %120 = vmatprep.mubr.f32.mxu0 0.0
    %121 = vmatmul.mubr.f32.gmra.mrb[0].mxu0 %v51
    %v122 = vpop.f32.mrb[0].mxu0
    %v123 = vadd.f32 %v47, %v122
    %v124 = vpop.f32.mrb[0].mxu0
    %125 = vmatprep.mubr.f32.mxu0 0.0
    %126 = vmatmul.mubr.f32.gmra.mrb[0].mxu0 %v54
    %v127 = vpop.f32.mrb[0].mxu0
    %v128 = vadd.f32 %v47, %v127
    %v129 = vpop.f32.mrb[0].mxu0
    %130 = vdwg.mxu0
    %133 = vrot.lane.b32.xlu0 %v123, 96
    %v134 = vpop.permute.xlu0 %133
    %135 = vrot.lane.b32.xlu0 %v128, 96
    %v136 = vpop.permute.xlu0 %135
    %v137 = vsel %vm49, %v123, 0
    %v139 = vsel %vm49, %v128, 0
    %v141 = vsel %vm49, %v134, 0
    %v143 = vsel %vm49, %v136, 0
    %145 = vmatprep.subr.mxu0 0.0
    %146 = vmatpush1.xpose.msra.mxu0 %v141
    %147 = vmatprep.subr.mxu0 0.0
    %148 = vmatpush1.xpose.msra.mxu0 %v143
    %149 = vmatprep.subr.mxu0 0.0
    %150 = vmatpush1.xpose.msra.mxu0 0.0
    %151 = vmatprep.subr.mxu0 0.0
    %152 = vmatpush1.xpose.msra.mxu0 0.0
    %153 = vmatprep.subr.mxu0 0.0
    %154 = vmatpush1.xpose.msra.mxu0 0.0
    %155 = vmatprep.subr.mxu0 0.0
    %156 = vmatpush1.xpose.msra.mxu0 0.0
    %157 = vmatprep.subr.mxu0 0.0
    %158 = vmatpush1.xpose.msra.mxu0 0.0
    %159 = vmatprep.subr.mxu0 0.0
    %160 = vmatpush1.xpose.msra.mxu0 0.0
    %161 = vmatprep.subr.mxu0 0.0
    %162 = vmatpush1.xpose.msra.mxu0 0.0
    %163 = vmatprep.subr.mxu0 0.0
    %164 = vmatpush1.xpose.msra.mxu0 0.0
    %165 = vmatprep.subr.mxu0 0.0
    %166 = vmatpush1.xpose.msra.mxu0 0.0
    %167 = vmatprep.subr.mxu0 0.0
    %168 = vmatpush1.xpose.msra.mxu0 0.0
    %169 = vmatprep.subr.mxu0 0.0
    %170 = vmatpush1.xpose.msra.mxu0 0.0
    %171 = vmatprep.subr.mxu0 0.0
    %172 = vmatpush1.xpose.msra.mxu0 0.0
    %173 = vmatprep.subr.mxu0 0.0
    %174 = vmatpush1.xpose.msra.mxu0 0.0
    %175 = vmatprep.subr.mxu0 0.0
    %176 = vmatpush1.xpose.msra.mxu0 0.0
    %177 = vmatprep.subr.mxu0 0.0
    %178 = vmatpush1.xpose.msra.mxu0 0.0
    %179 = vmatprep.subr.mxu0 0.0
    %180 = vmatpush1.xpose.msra.mxu0 0.0
    %181 = vmatprep.subr.mxu0 0.0
    %182 = vmatpush1.xpose.msra.mxu0 0.0
    %183 = vmatprep.subr.mxu0 0.0
    %184 = vmatpush1.xpose.msra.mxu0 0.0
    %185 = vmatprep.subr.mxu0 0.0
    %186 = vmatpush1.xpose.msra.mxu0 0.0
    %187 = vmatprep.subr.mxu0 0.0
    %188 = vmatpush1.xpose.msra.mxu0 0.0
    %189 = vmatprep.subr.mxu0 0.0
    %190 = vmatpush1.xpose.msra.mxu0 0.0
    %191 = vmatprep.subr.mxu0 0.0
    %192 = vmatpush1.xpose.msra.mxu0 0.0
    %193 = vmatprep.subr.mxu0 0.0
    %194 = vmatpush1.xpose.msra.mxu0 0.0
    %195 = vmatprep.subr.mxu0 0.0
    %196 = vmatpush1.xpose.msra.mxu0 0.0
    %197 = vmatprep.subr.mxu0 0.0
    %198 = vmatpush1.xpose.msra.mxu0 0.0
    %199 = vmatprep.subr.mxu0 0.0
    %200 = vmatpush1.xpose.msra.mxu0 0.0
    %201 = vmatprep.subr.mxu0 0.0
    %202 = vmatpush1.xpose.msra.mxu0 0.0
    %203 = vmatprep.subr.mxu0 0.0
    %204 = vmatpush1.xpose.msra.mxu0 0.0
    %205 = vmatprep.subr.mxu0 0.0
    %206 = vmatpush1.xpose.msra.mxu0 0.0
    %207 = vmatprep.subr.mxu0 0.0
    %208 = vmatpush1.xpose.msra.mxu0 0.0
    %209 = vmatprep.mubr.f32.mxu0 0.0
    %210 = vmatmul.mubr.f32.gmra.mrb[0].mxu0 %v137
    %v211 = vpop.f32.mrb[0].mxu0
    %v212 = vadd.f32 %v35, %v211
    %v213 = vpop.f32.mrb[0].mxu0
    %214 = vmatprep.mubr.f32.mxu0 0.0
    %215 = vmatmul.mubr.f32.gmra.mrb[0].mxu0 %v139
    %v216 = vpop.f32.mrb[0].mxu0
    %v217 = vadd.f32 %v36, %v216
    %v218 = vpop.f32.mrb[0].mxu0
    %219 = vdwg.mxu0
    %vm220 = vcmask 130048
    %v221 = vsel %vm220, %v212, -inf
    %222 = vmax.xlane.f32.xlu0 %v221
    %v223 = vpop.xlane.xlu0 %222
    %v224 = vsel %vm220, %v217, -inf
    %225 = vmax.xlane.f32.xlu0 %v224
    %v226 = vpop.xlane.xlu0 %225
    %v227 = vsub.f32 %v212, %v223
    %v228 = vsub.f32 %v217, %v226
    %v229 = vmul.f32 %v227, 1.442695
    %v230 = vpow.pop %v229
    %v231 = vmul.f32 %v228, 1.442695
    %v232 = vpow.pop %v231
    %v233 = vsel %vm220, %v230, 0.0
    %234 = vadd.xlane.f32.xlu0 %v233
    %v235 = vpop.xlane.xlu0 %234
    %v236 = vsel %vm220, %v232, 0.0
    %237 = vadd.xlane.f32.xlu0 %v236
    %v238 = vpop.xlane.xlu0 %237
    %v239 = vrcp.pop %v235
    %v240 = vrcp.pop %v238
    %v241 = vmul.f32 %v230, %v239
    %v242 = vmul.f32 %v232, %v240
    %243 = vrot.lane.b32.xlu0 %v123, 64
    %v244 = vpop.permute.xlu0 %243
    %245 = vrot.lane.b32.xlu0 %v128, 64
    %v246 = vpop.permute.xlu0 %245
    %v250 = vsel %vm220, %v241, 0
    %v253 = vsel %vm220, %v242, 0
    %255 = vmatprep.subr.mxu0 0.0
    %256 = vmatpush1.msra.mxu0 %v244
    %257 = vmatprep.subr.mxu0 0.0
    %258 = vmatpush1.msra.mxu0 %v246
    %259 = vmatprep.subr.mxu0 0.0
    %260 = vmatpush1.msra.mxu0 0.0
    %261 = vmatprep.subr.mxu0 0.0
    %262 = vmatpush1.msra.mxu0 0.0
    %263 = vmatprep.subr.mxu0 0.0
    %264 = vmatpush1.msra.mxu0 0.0
    %265 = vmatprep.subr.mxu0 0.0
    %266 = vmatpush1.msra.mxu0 0.0
    %267 = vmatprep.subr.mxu0 0.0
    %268 = vmatpush1.msra.mxu0 0.0
    %269 = vmatprep.subr.mxu0 0.0
    %270 = vmatpush1.msra.mxu0 0.0
    %271 = vmatprep.subr.mxu0 0.0
    %272 = vmatpush1.msra.mxu0 0.0
    %273 = vmatprep.subr.mxu0 0.0
    %274 = vmatpush1.msra.mxu0 0.0
    %275 = vmatprep.subr.mxu0 0.0
    %276 = vmatpush1.msra.mxu0 0.0
    %277 = vmatprep.subr.mxu0 0.0
    %278 = vmatpush1.msra.mxu0 0.0
    %279 = vmatprep.subr.mxu0 0.0
    %280 = vmatpush1.msra.mxu0 0.0
    %281 = vmatprep.subr.mxu0 0.0
    %282 = vmatpush1.msra.mxu0 0.0
    %283 = vmatprep.subr.mxu0 0.0
    %284 = vmatpush1.msra.mxu0 0.0
    %285 = vmatprep.subr.mxu0 0.0
    %286 = vmatpush1.msra.mxu0 0.0
    %287 = vmatprep.subr.mxu0 0.0
    %288 = vmatpush1.msra.mxu0 0.0
    %289 = vmatprep.subr.mxu0 0.0
    %290 = vmatpush1.msra.mxu0 0.0
    %291 = vmatprep.subr.mxu0 0.0
    %292 = vmatpush1.msra.mxu0 0.0
    %293 = vmatprep.subr.mxu0 0.0
    %294 = vmatpush1.msra.mxu0 0.0
    %295 = vmatprep.subr.mxu0 0.0
    %296 = vmatpush1.msra.mxu0 0.0
    %297 = vmatprep.subr.mxu0 0.0
    %298 = vmatpush1.msra.mxu0 0.0
    %299 = vmatprep.subr.mxu0 0.0
    %300 = vmatpush1.msra.mxu0 0.0
    %301 = vmatprep.subr.mxu0 0.0
    %302 = vmatpush1.msra.mxu0 0.0
    %303 = vmatprep.subr.mxu0 0.0
    %304 = vmatpush1.msra.mxu0 0.0
    %305 = vmatprep.subr.mxu0 0.0
    %306 = vmatpush1.msra.mxu0 0.0
    %307 = vmatprep.subr.mxu0 0.0
    %308 = vmatpush1.msra.mxu0 0.0
    %309 = vmatprep.subr.mxu0 0.0
    %310 = vmatpush1.msra.mxu0 0.0
    %311 = vmatprep.subr.mxu0 0.0
    %312 = vmatpush1.msra.mxu0 0.0
    %313 = vmatprep.subr.mxu0 0.0
    %314 = vmatpush1.msra.mxu0 0.0
    %315 = vmatprep.subr.mxu0 0.0
    %316 = vmatpush1.msra.mxu0 0.0
    %317 = vmatprep.subr.mxu0 0.0
    %318 = vmatpush1.msra.mxu0 0.0
    %319 = vmatprep.mubr.f32.mxu0 0.0
    %320 = vmatmul.mubr.f32.gmra.mrb[0].mxu0 %v250
    %v321 = vpop.f32.mrb[0].mxu0
    %v322 = vadd.f32 0.0, %v321
    %v323 = vpop.f32.mrb[0].mxu0
    %324 = vmatprep.mubr.f32.mxu0 0.0
    %325 = vmatmul.mubr.f32.gmra.mrb[0].mxu0 %v253
    %v326 = vpop.f32.mrb[0].mxu0
    %v327 = vadd.f32 0.0, %v326
    %v328 = vpop.f32.mrb[0].mxu0
    %329 = vdwg.mxu0
    %v330 = vld [vmem:[%s4] sm:$0xff]
    %v331 = vld [vmem:[%s4 + $0x8] sm:$0xff]
    %v332 = vld [vmem:[%s4 + $0x10] sm:$0xff]
    %v333 = vld [vmem:[%s4 + $0x18] sm:$0xff]
    %v334 = vlaneseq
    %v335 = vshrl.u32 %v334, 7
    %v336 = vsub.s32 0, %v335
    %v337 = vrot.slane %v37, %v336
    %v339 = vsel %vm49, %v322, 0
    %v342 = vsel %vm49, %v327, 0
    %344 = vmatprep.subr.mxu0 0.0
    %345 = vmatpush1.msra.mxu0 %v330
    %346 = vmatprep.subr.mxu0 0.0
    %347 = vmatpush1.msra.mxu0 %v331
    %348 = vmatprep.subr.mxu0 0.0
    %349 = vmatpush1.msra.mxu0 %v332
    %350 = vmatprep.subr.mxu0 0.0
    %351 = vmatpush1.msra.mxu0 %v333
    %352 = vmatprep.subr.mxu0 0.0
    %353 = vmatpush1.msra.mxu0 0.0
    %354 = vmatprep.subr.mxu0 0.0
    %355 = vmatpush1.msra.mxu0 0.0
    %356 = vmatprep.subr.mxu0 0.0
    %357 = vmatpush1.msra.mxu0 0.0
    %358 = vmatprep.subr.mxu0 0.0
    %359 = vmatpush1.msra.mxu0 0.0
    %360 = vmatprep.subr.mxu0 0.0
    %361 = vmatpush1.msra.mxu0 0.0
    %362 = vmatprep.subr.mxu0 0.0
    %363 = vmatpush1.msra.mxu0 0.0
    %364 = vmatprep.subr.mxu0 0.0
    %365 = vmatpush1.msra.mxu0 0.0
    %366 = vmatprep.subr.mxu0 0.0
    %367 = vmatpush1.msra.mxu0 0.0
    %368 = vmatprep.subr.mxu0 0.0
    %369 = vmatpush1.msra.mxu0 0.0
    %370 = vmatprep.subr.mxu0 0.0
    %371 = vmatpush1.msra.mxu0 0.0
    %372 = vmatprep.subr.mxu0 0.0
    %373 = vmatpush1.msra.mxu0 0.0
    %374 = vmatprep.subr.mxu0 0.0
    %375 = vmatpush1.msra.mxu0 0.0
    %376 = vmatprep.subr.mxu0 0.0
    %377 = vmatpush1.msra.mxu0 0.0
    %378 = vmatprep.subr.mxu0 0.0
    %379 = vmatpush1.msra.mxu0 0.0
    %380 = vmatprep.subr.mxu0 0.0
    %381 = vmatpush1.msra.mxu0 0.0
    %382 = vmatprep.subr.mxu0 0.0
    %383 = vmatpush1.msra.mxu0 0.0
    %384 = vmatprep.subr.mxu0 0.0
    %385 = vmatpush1.msra.mxu0 0.0
    %386 = vmatprep.subr.mxu0 0.0
    %387 = vmatpush1.msra.mxu0 0.0
    %388 = vmatprep.subr.mxu0 0.0
    %389 = vmatpush1.msra.mxu0 0.0
    %390 = vmatprep.subr.mxu0 0.0
    %391 = vmatpush1.msra.mxu0 0.0
    %392 = vmatprep.subr.mxu0 0.0
    %393 = vmatpush1.msra.mxu0 0.0
    %394 = vmatprep.subr.mxu0 0.0
    %395 = vmatpush1.msra.mxu0 0.0
    %396 = vmatprep.subr.mxu0 0.0
    %397 = vmatpush1.msra.mxu0 0.0
    %398 = vmatprep.subr.mxu0 0.0
    %399 = vmatpush1.msra.mxu0 0.0
    %400 = vmatprep.subr.mxu0 0.0
    %401 = vmatpush1.msra.mxu0 0.0
    %402 = vmatprep.subr.mxu0 0.0
    %403 = vmatpush1.msra.mxu0 0.0
    %404 = vmatprep.subr.mxu0 0.0
    %405 = vmatpush1.msra.mxu0 0.0
    %406 = vmatprep.subr.mxu0 0.0
    %407 = vmatpush1.msra.mxu0 0.0
    %408 = vmatprep.mubr.f32.mxu0 0.0
    %409 = vmatmul.mubr.f32.gmra.mrb[0].mxu0 %v339
    %v410 = vpop.f32.mrb[0].mxu0
    %v411 = vadd.f32 %v337, %v410
    %v412 = vpop.f32.mrb[0].mxu0
    %413 = vmatprep.mubr.f32.mxu0 0.0
    %414 = vmatmul.mubr.f32.gmra.mrb[0].mxu0 %v342
    %v415 = vpop.f32.mrb[0].mxu0
    %v416 = vadd.f32 %v337, %v415
    %v417 = vpop.f32.mrb[0].mxu0
    %418 = vdwg.mxu0
    %v419 = vadd.f32 %v411, %v33
    %v420 = vadd.f32 %v416, %v34
    %v421 = vsel %vm49, %v419, 0.0
    %422 = vadd.xlane.f32.xlu0 %v421
    %v423 = vpop.xlane.xlu0 %422
    %v424 = vsel %vm49, %v420, 0.0
    %425 = vadd.xlane.f32.xlu0 %v424
    %v426 = vpop.xlane.xlu0 %425
    %v427 = vrcp.pop 32.0
    %v428 = vmul.f32 %v423, %v427
    %v429 = vmul.f32 %v426, %v427
    %v430 = vsub.f32 %v419, %v428
    %v431 = vsub.f32 %v420, %v429
    %v432 = vmul.f32 %v430, %v430
    %v433 = vmul.f32 %v431, %v431
    %v434 = vsel %vm49, %v432, 0.0
    %435 = vadd.xlane.f32.xlu0 %v434
    %v436 = vpop.xlane.xlu0 %435
    %v437 = vsel %vm49, %v433, 0.0
    %438 = vadd.xlane.f32.xlu0 %v437
    %v439 = vpop.xlane.xlu0 %438
    %v440 = vmul.f32 %v436, %v427
    %v441 = vmul.f32 %v439, %v427
    %v442 = vadd.f32 %v440, 1e-12
    %v443 = vadd.f32 %v441, 1e-12
    %v444 = vrsqrt.pop %v442
    %v445 = vrsqrt.pop %v443
    %v446 = vmul.f32 %v430, %v444
    %v447 = vmul.f32 %v431, %v445
    %v448 = vlaneseq
    %v449 = vshrl.u32 %v448, 7
    %v450 = vsub.s32 2, %v449
    %v451 = vrot.slane %v37, %v450
    %v452 = vmul.f32 %v446, %v451
    %v453 = vmul.f32 %v447, %v451
    %v454 = vlaneseq
    %v455 = vshrl.u32 %v454, 7
    %v456 = vsub.s32 3, %v455
    %v457 = vrot.slane %v37, %v456
    %v458 = vadd.f32 %v452, %v457
    %v459 = vadd.f32 %v453, %v457
    %v460 = vld [vmem:[%s5] sm:$0xff]
    %v461 = vld [vmem:[%s5 + $0x8] sm:$0xff]
    %v462 = vld [vmem:[%s5 + $0x10] sm:$0xff]
    %v463 = vld [vmem:[%s5 + $0x18] sm:$0xff]
    %v464 = vld [vmem:[%s8] sm:$0x1]
    %v466 = vlaneseq
    %v467 = vshrl.u32 %v466, 7
    %v468 = vsub.s32 0, %v467
    %v469 = vrot.slane %v464, %v468
    %v472 = vsel %vm49, %v458, 0
    %v475 = vsel %vm49, %v459, 0
    %477 = vmatprep.subr.mxu0 0.0
    %478 = vmatpush1.msra.mxu0 %v460
    %479 = vmatprep.subr.mxu0 0.0
    %480 = vmatpush1.msra.mxu0 %v461
    %481 = vmatprep.subr.mxu0 0.0
    %482 = vmatpush1.msra.mxu0 %v462
    %483 = vmatprep.subr.mxu0 0.0
    %484 = vmatpush1.msra.mxu0 %v463
    %485 = vmatprep.subr.mxu0 0.0
    %486 = vmatpush1.msra.mxu0 0.0
    %487 = vmatprep.subr.mxu0 0.0
    %488 = vmatpush1.msra.mxu0 0.0
    %489 = vmatprep.subr.mxu0 0.0
    %490 = vmatpush1.msra.mxu0 0.0
    %491 = vmatprep.subr.mxu0 0.0
    %492 = vmatpush1.msra.mxu0 0.0
    %493 = vmatprep.subr.mxu0 0.0
    %494 = vmatpush1.msra.mxu0 0.0
    %495 = vmatprep.subr.mxu0 0.0
    %496 = vmatpush1.msra.mxu0 0.0
    %497 = vmatprep.subr.mxu0 0.0
    %498 = vmatpush1.msra.mxu0 0.0
    %499 = vmatprep.subr.mxu0 0.0
    %500 = vmatpush1.msra.mxu0 0.0
    %501 = vmatprep.subr.mxu0 0.0
    %502 = vmatpush1.msra.mxu0 0.0
    %503 = vmatprep.subr.mxu0 0.0
    %504 = vmatpush1.msra.mxu0 0.0
    %505 = vmatprep.subr.mxu0 0.0
    %506 = vmatpush1.msra.mxu0 0.0
    %507 = vmatprep.subr.mxu0 0.0
    %508 = vmatpush1.msra.mxu0 0.0
    %509 = vmatprep.subr.mxu0 0.0
    %510 = vmatpush1.msra.mxu0 0.0
    %511 = vmatprep.subr.mxu0 0.0
    %512 = vmatpush1.msra.mxu0 0.0
    %513 = vmatprep.subr.mxu0 0.0
    %514 = vmatpush1.msra.mxu0 0.0
    %515 = vmatprep.subr.mxu0 0.0
    %516 = vmatpush1.msra.mxu0 0.0
    %517 = vmatprep.subr.mxu0 0.0
    %518 = vmatpush1.msra.mxu0 0.0
    %519 = vmatprep.subr.mxu0 0.0
    %520 = vmatpush1.msra.mxu0 0.0
    %521 = vmatprep.subr.mxu0 0.0
    %522 = vmatpush1.msra.mxu0 0.0
    %523 = vmatprep.subr.mxu0 0.0
    %524 = vmatpush1.msra.mxu0 0.0
    %525 = vmatprep.subr.mxu0 0.0
    %526 = vmatpush1.msra.mxu0 0.0
    %527 = vmatprep.subr.mxu0 0.0
    %528 = vmatpush1.msra.mxu0 0.0
    %529 = vmatprep.subr.mxu0 0.0
    %530 = vmatpush1.msra.mxu0 0.0
    %531 = vmatprep.subr.mxu0 0.0
    %532 = vmatpush1.msra.mxu0 0.0
    %533 = vmatprep.subr.mxu0 0.0
    %534 = vmatpush1.msra.mxu0 0.0
    %535 = vmatprep.subr.mxu0 0.0
    %536 = vmatpush1.msra.mxu0 0.0
    %537 = vmatprep.subr.mxu0 0.0
    %538 = vmatpush1.msra.mxu0 0.0
    %539 = vmatprep.subr.mxu0 0.0
    %540 = vmatpush1.msra.mxu0 0.0
    %541 = vmatprep.mubr.f32.mxu0 0.0
    %542 = vmatmul.mubr.f32.gmra.mrb[0].mxu0 %v472
    %v543 = vpop.f32.mrb[0].mxu0
    %v544 = vadd.f32 %v469, %v543
    %v545 = vpop.f32.mrb[0].mxu0
    %546 = vmatprep.mubr.f32.mxu0 0.0
    %547 = vmatmul.mubr.f32.gmra.mrb[0].mxu0 %v475
    %v548 = vpop.f32.mrb[0].mxu0
    %v549 = vadd.f32 %v469, %v548
    %v550 = vpop.f32.mrb[0].mxu0
    %551 = vdwg.mxu0
    %v552 = vmul.f32 %v544, 0.5
    %v553 = vmul.f32 %v549, 0.5
    %v554 = vrcp.pop 1.4142135
    %v555 = vmul.f32 %v544, %v554
    %v556 = vmul.f32 %v549, %v554
    %v557 = verf.f32.pop %v555
    %v558 = verf.f32.pop %v556
    %v559 = vadd.f32 %v557, 1.0
    %v560 = vadd.f32 %v558, 1.0
    %v561 = vmul.f32 %v552, %v559
    %v562 = vmul.f32 %v553, %v560
    %v563 = vld [vmem:[%s6] sm:$0xff]
    %v564 = vld [vmem:[%s6 + $0x8] sm:$0xff]
    %v565 = vld [vmem:[%s6 + $0x10] sm:$0xff]
    %v566 = vld [vmem:[%s6 + $0x18] sm:$0xff]
    %v567 = vld [vmem:[%s6 + $0x20] sm:$0xff]
    %v568 = vld [vmem:[%s6 + $0x28] sm:$0xff]
    %v569 = vld [vmem:[%s6 + $0x30] sm:$0xff]
    %v570 = vld [vmem:[%s6 + $0x38] sm:$0xff]
    %v571 = vld [vmem:[%s6 + $0x40] sm:$0xff]
    %v572 = vld [vmem:[%s6 + $0x48] sm:$0xff]
    %v573 = vld [vmem:[%s6 + $0x50] sm:$0xff]
    %v574 = vld [vmem:[%s6 + $0x58] sm:$0xff]
    %v575 = vld [vmem:[%s6 + $0x60] sm:$0xff]
    %v576 = vld [vmem:[%s6 + $0x68] sm:$0xff]
    %v577 = vld [vmem:[%s6 + $0x70] sm:$0xff]
    %v578 = vld [vmem:[%s6 + $0x78] sm:$0xff]
    %v579 = vlaneseq
    %v580 = vshrl.u32 %v579, 7
    %v581 = vsub.s32 1, %v580
    %v582 = vrot.slane %v37, %v581
    %583 = vmatprep.subr.mxu0 0.0
    %584 = vmatpush1.msra.mxu0 %v563
    %585 = vmatprep.subr.mxu0 0.0
    %586 = vmatpush1.msra.mxu0 %v564
    %587 = vmatprep.subr.mxu0 0.0
    %588 = vmatpush1.msra.mxu0 %v565
    %589 = vmatprep.subr.mxu0 0.0
    %590 = vmatpush1.msra.mxu0 %v566
    %591 = vmatprep.subr.mxu0 0.0
    %592 = vmatpush1.msra.mxu0 %v567
    %593 = vmatprep.subr.mxu0 0.0
    %594 = vmatpush1.msra.mxu0 %v568
    %595 = vmatprep.subr.mxu0 0.0
    %596 = vmatpush1.msra.mxu0 %v569
    %597 = vmatprep.subr.mxu0 0.0
    %598 = vmatpush1.msra.mxu0 %v570
    %599 = vmatprep.subr.mxu0 0.0
    %600 = vmatpush1.msra.mxu0 %v571
    %601 = vmatprep.subr.mxu0 0.0
    %602 = vmatpush1.msra.mxu0 %v572
    %603 = vmatprep.subr.mxu0 0.0
    %604 = vmatpush1.msra.mxu0 %v573
    %605 = vmatprep.subr.mxu0 0.0
    %606 = vmatpush1.msra.mxu0 %v574
    %607 = vmatprep.subr.mxu0 0.0
    %608 = vmatpush1.msra.mxu0 %v575
    %609 = vmatprep.subr.mxu0 0.0
    %610 = vmatpush1.msra.mxu0 %v576
    %611 = vmatprep.subr.mxu0 0.0
    %612 = vmatpush1.msra.mxu0 %v577
    %613 = vmatprep.subr.mxu0 0.0
    %614 = vmatpush1.msra.mxu0 %v578
    %615 = vmatprep.subr.mxu0 0.0
    %616 = vmatpush1.msra.mxu0 0.0
    %617 = vmatprep.subr.mxu0 0.0
    %618 = vmatpush1.msra.mxu0 0.0
    %619 = vmatprep.subr.mxu0 0.0
    %620 = vmatpush1.msra.mxu0 0.0
    %621 = vmatprep.subr.mxu0 0.0
    %622 = vmatpush1.msra.mxu0 0.0
    %623 = vmatprep.subr.mxu0 0.0
    %624 = vmatpush1.msra.mxu0 0.0
    %625 = vmatprep.subr.mxu0 0.0
    %626 = vmatpush1.msra.mxu0 0.0
    %627 = vmatprep.subr.mxu0 0.0
    %628 = vmatpush1.msra.mxu0 0.0
    %629 = vmatprep.subr.mxu0 0.0
    %630 = vmatpush1.msra.mxu0 0.0
    %631 = vmatprep.subr.mxu0 0.0
    %632 = vmatpush1.msra.mxu0 0.0
    %633 = vmatprep.subr.mxu0 0.0
    %634 = vmatpush1.msra.mxu0 0.0
    %635 = vmatprep.subr.mxu0 0.0
    %636 = vmatpush1.msra.mxu0 0.0
    %637 = vmatprep.subr.mxu0 0.0
    %638 = vmatpush1.msra.mxu0 0.0
    %639 = vmatprep.subr.mxu0 0.0
    %640 = vmatpush1.msra.mxu0 0.0
    %641 = vmatprep.subr.mxu0 0.0
    %642 = vmatpush1.msra.mxu0 0.0
    %643 = vmatprep.subr.mxu0 0.0
    %644 = vmatpush1.msra.mxu0 0.0
    %645 = vmatprep.subr.mxu0 0.0
    %646 = vmatpush1.msra.mxu0 0.0
    %647 = vmatprep.mubr.f32.mxu0 0.0
    %648 = vmatmul.mubr.f32.gmra.mrb[0].mxu0 %v561
    %v649 = vpop.f32.mrb[0].mxu0
    %v650 = vadd.f32 %v582, %v649
    %v651 = vpop.f32.mrb[0].mxu0
    %652 = vmatprep.mubr.f32.mxu0 0.0
    %653 = vmatmul.mubr.f32.gmra.mrb[0].mxu0 %v562
    %v654 = vpop.f32.mrb[0].mxu0
    %v655 = vadd.f32 %v582, %v654
    %v656 = vpop.f32.mrb[0].mxu0
    %657 = vdwg.mxu0
    %v658 = vadd.f32 %v650, %v458
    %v659 = vadd.f32 %v655, %v459
    %v660 = vsel %vm49, %v658, 0.0
    %661 = vadd.xlane.f32.xlu0 %v660
    %v662 = vpop.xlane.xlu0 %661
    %v663 = vsel %vm49, %v659, 0.0
    %664 = vadd.xlane.f32.xlu0 %v663
    %v665 = vpop.xlane.xlu0 %664
    %v666 = vmul.f32 %v662, %v427
    %v667 = vmul.f32 %v665, %v427
    %v668 = vsub.f32 %v658, %v666
    %v669 = vsub.f32 %v659, %v667
    %v670 = vmul.f32 %v668, %v668
    %v671 = vmul.f32 %v669, %v669
    %v672 = vsel %vm49, %v670, 0.0
    %673 = vadd.xlane.f32.xlu0 %v672
    %v674 = vpop.xlane.xlu0 %673
    %v675 = vsel %vm49, %v671, 0.0
    %676 = vadd.xlane.f32.xlu0 %v675
    %v677 = vpop.xlane.xlu0 %676
    %v678 = vmul.f32 %v674, %v427
    %v679 = vmul.f32 %v677, %v427
    %v680 = vadd.f32 %v678, 1e-12
    %v681 = vadd.f32 %v679, 1e-12
    %v682 = vrsqrt.pop %v680
    %v683 = vrsqrt.pop %v681
    %v684 = vmul.f32 %v668, %v682
    %v685 = vmul.f32 %v669, %v683
    %v686 = vlaneseq
    %v687 = vshrl.u32 %v686, 7
    %v688 = vsub.s32 4, %v687
    %v689 = vrot.slane %v37, %v688
    %v690 = vmul.f32 %v684, %v689
    %v691 = vmul.f32 %v685, %v689
    %v692 = vlaneseq
    %v693 = vshrl.u32 %v692, 7
    %v694 = vsub.s32 5, %v693
    %v695 = vrot.slane %v37, %v694
    %v696 = vadd.f32 %v690, %v695
    %v697 = vadd.f32 %v691, %v695
    %698 = vst.msk [vmem:[#allocation2] sm:$0xff] %vm49, %v696
    %699 = vst.msk [vmem:[#allocation2 + $0x8] sm:$0xff] %vm49, %v697
    // Predicated region
    $region38: #{tpu_custom_call.1} parent=1 // pred_check
      _
    $region39: #{tpu_custom_call.1} parent=1 // pred_check_branch
      %701 = sbr.rel (0) target = $region41
    $region40: #{tpu_custom_call.1} parent=1 // pred_region
      %s703 = ssub.s32 256, 256
      %704 = vsyncadd [#allocation3], %s703
      %s705 = sshll.u32 [#allocation2], 4
      %s706 = int_to_ptr.vmem [resolvable:$true] %s705
      %711 = dma.vmem_to_hbm [thread:$0]  %s706, 256, %s9, [#allocation3], 128, 128, 8
    $region41: #{tpu_custom_call.1} parent=1 // pred_fallthru
      _
    // Predicated region
    $region42: #{tpu_custom_call.1} parent=1 // pred_check
      _
    $region43: #{tpu_custom_call.1} parent=1 // pred_check_branch
      %713 = sbr.rel (0) target = $region45
    $region44: #{tpu_custom_call.1} parent=1 // pred_region
      %714 = dma.done [#allocation3], 256
    $region45: #{tpu_custom_call.1} parent=1 // pred_fallthru
      _
    %715 = vsyncpa [#allocation3], 1

</llo_original>
